<compile_context>
chip_gen: v7x
topology: tpu7x:2x2x1
jax: 0.10.0
libtpu: 0.0.40
codegen_flags: <defaults>
</compile_context>

<pallas_src>
import functools

import jax
import jax.numpy as jnp
from jax import lax
from jax.experimental import pallas as pl
from jax.experimental.pallas import tpu as pltpu

GAMMA_NEG = 4.0
GAMMA_POS = 1.0
CLIP = 0.05
EPS = 1e-8

_MAX_BLOCK_COLS = 2048
_SMALL_VMEM_BUDGET_ELEMS = 512 * 2048    # ~4 MiB f32 per x tile (v7x, 64 MiB VMEM)
_LARGE_VMEM_BUDGET_ELEMS = 1024 * 2048   # ~8 MiB f32 per x tile (v5e/v6e, 128 MiB)
_SMALL_VMEM_LIMIT = 48 * 1024 * 1024
_LARGE_VMEM_LIMIT = 96 * 1024 * 1024


def _vmem_capacity_bytes():
    try:
        info = pltpu.get_tpu_info()
        cap = getattr(info, "vmem_capacity_bytes", None)
        if cap:
            return int(cap)
    except Exception:
        pass
    return 64 * 1024 * 1024  # conservative (v7x-sized)


def _round_up(a, b):
    return -(-a // b) * b


def _pow_static(base, gamma):
    """base ** gamma with a trace-time-known exponent.

    Integer exponents use repeated squaring (pure VPU) instead of the
    exp(g*log(x)) path jnp.power takes for float exponents (2 EUP ops/elt).
    """
    g = float(gamma)
    if g == 0.0:
        return jnp.ones_like(base)
    if g.is_integer() and 0 < g <= 16:
        k = int(g)
        result = None
        sq = base
        while k:
            if k & 1:
                result = sq if result is None else result * sq
            k >>= 1
            if k:
                sq = sq * sq
        return result
    return jnp.power(base, g)


def _tile_loss(x, y, gamma_neg, gamma_pos, clip, eps):
    """Per-element (un-negated, un-reduced) asymmetric loss for one tile."""
    x = x.astype(jnp.float32)
    # Targets are binarized (multi-label 0/1 vector), per the module contract.
    # TODO(synk): soft (fractional) labels would need the two-log formulation.
    if jnp.issubdtype(y.dtype, jnp.integer) or y.dtype == jnp.bool_:
        is_pos = y != 0
    else:
        is_pos = y >= jnp.asarray(0.5, y.dtype)

    # logistic(x) == 0.5*(tanh(0.5x)+1): a single EUP transcendental.
    xs_pos = 0.5 * (jnp.tanh(0.5 * x) + 1.0)
    xs_neg = 1.0 - xs_pos
    if clip is not None and clip > 0:
        xs_neg = jnp.minimum(xs_neg + clip, 1.0)  # asymmetric clipping

    # y binary => y*log(p_pos) + (1-y)*log(p_neg) == log(selected prob):
    # one log per element instead of two.
    p = jnp.where(is_pos, xs_pos, xs_neg)
    loss = jnp.log(jnp.maximum(p, eps))

    if gamma_neg > 0 or gamma_pos > 0:
        om = 1.0 - p  # == 1 - pt of the reference, always >= 0
        w = jnp.where(is_pos,
                      _pow_static(om, gamma_pos),
                      _pow_static(om, gamma_neg))
        loss = loss * w
    return loss


def _fold_to_vreg(t, block_rows, block_cols):
    """(block_rows, block_cols) f32 -> (8,128) partial sums.

    Lane-block and sublane-block aligned slices + VPU adds only: no XLU
    cross-lane reduce and no relayout-inducing reshape.
    """
    acc = t[:, 0:128]
    for k in range(1, block_cols // 128):
        acc = acc + t[:, k * 128:(k + 1) * 128]
    out = acc[0:8, :]
    for r in range(1, block_rows // 8):
        out = out + acc[r * 8:(r + 1) * 8, :]
    return out


def _asl_kernel(x_ref, y_ref, out_ref, *, n, c, block_rows, block_cols,
                n_col_blocks, needs_row_mask, needs_col_mask,
                gamma_neg, gamma_pos, clip, eps):
    loss = _tile_loss(x_ref[...], y_ref[...], gamma_neg, gamma_pos, clip, eps)

    if needs_row_mask or needs_col_mask:
        mask = None
        if needs_row_mask:
            row = (lax.broadcasted_iota(jnp.int32, (block_rows, block_cols), 0)
                   + pl.program_id(0) * block_rows)
            mask = row < n
        if needs_col_mask:
            col = (lax.broadcasted_iota(jnp.int32, (block_rows, block_cols), 1)
                   + pl.program_id(1) * block_cols)
            cmask = col < c
            mask = cmask if mask is None else (mask & cmask)
        loss = jnp.where(mask, loss, 0.0)

    partial = _fold_to_vreg(loss, block_rows, block_cols)[None, :, :]

    if n_col_blocks == 1:
        out_ref[...] = partial
    else:
        # Output block index is constant across the column axis -> resident
        # (1,8,128) accumulator; written back to HBM when the row block changes.
        j = pl.program_id(1)

        @pl.when(j == 0)
        def _():
            out_ref[...] = partial

        @pl.when(j != 0)
        def _():
            out_ref[...] = out_ref[...] + partial


def asymmetric_loss(x, y, *, gamma_neg=GAMMA_NEG, gamma_pos=GAMMA_POS,
                    clip=CLIP, eps=EPS, reduction="mean"):
    """Pallas implementation of AsymmetricLoss.forward. x, y: (N, C).

    x may be float32 or bfloat16 (cast to f32 in-kernel, f32 accumulation).
    y may be int8/uint8/bool (exact for {0,1} targets, least HBM traffic) or
    any float dtype holding binarized targets.
    """
    assert x.shape == y.shape and x.ndim == 2
    n, c = x.shape
    if y.dtype == jnp.bool_:
        y = y.astype(jnp.int8)

    vmem_cap = _vmem_capacity_bytes()
    big_vmem = vmem_cap >= 100 * 1024 * 1024
    budget = _LARGE_VMEM_BUDGET_ELEMS if big_vmem else _SMALL_VMEM_BUDGET_ELEMS
    vmem_limit = _LARGE_VMEM_LIMIT if big_vmem else _SMALL_VMEM_LIMIT

    min_bytes = min(jnp.dtype(x.dtype).itemsize, jnp.dtype(y.dtype).itemsize, 4)
    row_mult = 8 * (4 // min_bytes)  # 8 for f32, 16 for bf16, 32 for int8

    block_cols = min(_round_up(c, 128), _MAX_BLOCK_COLS)
    padded_c = _round_up(c, block_cols)
    n_col_blocks = padded_c // block_cols

    row_limit = max(row_mult, (budget // block_cols) // row_mult * row_mult)
    block_rows = min(row_limit, _round_up(n, row_mult))
    # Prefer >=2 row blocks: shards the "parallel" axis across both v7x
    # TensorCores and gives the auto-pipeline >=2 steps to hide the first DMA.
    if block_rows >= n and n > row_mult:
        block_rows = _round_up(pl.cdiv(n, 2), row_mult)
    n_row_blocks = pl.cdiv(n, block_rows)
    padded_n = n_row_blocks * block_rows

    if padded_n != n or padded_c != c:
        x = jnp.pad(x, ((0, padded_n - n), (0, padded_c - c)))
        y = jnp.pad(y, ((0, padded_n - n), (0, padded_c - c)))

    kernel = functools.partial(
        _asl_kernel, n=n, c=c, block_rows=block_rows, block_cols=block_cols,
        n_col_blocks=n_col_blocks,
        needs_row_mask=(padded_n != n), needs_col_mask=(padded_c != c),
        gamma_neg=gamma_neg, gamma_pos=gamma_pos, clip=clip, eps=eps)

    partials = pl.pallas_call(
        kernel,
        out_shape=jax.ShapeDtypeStruct((n_row_blocks, 8, 128), jnp.float32),
        grid_spec=pltpu.PrefetchScalarGridSpec(
            num_scalar_prefetch=0,
            grid=(n_row_blocks, n_col_blocks),
            in_specs=[
                pl.BlockSpec((block_rows, block_cols), lambda i, j: (i, j)),
                pl.BlockSpec((block_rows, block_cols), lambda i, j: (i, j)),
            ],
            out_specs=pl.BlockSpec((1, 8, 128), lambda i, j: (i, 0, 0)),
        ),
        compiler_params=pltpu.CompilerParams(
            dimension_semantics=("parallel", "arbitrary"),
            vmem_limit_bytes=vmem_limit),
    )(x, y)

    loss_sum = jnp.sum(partials)
    if reduction == "mean":
        loss = loss_sum / (n * c)
    elif reduction == "sum":
        loss = loss_sum
    else:
        raise ValueError(f"unsupported reduction: {reduction}")
    return -loss


def _reference(x, y, *, gamma_neg=GAMMA_NEG, gamma_pos=GAMMA_POS,
               clip=CLIP, eps=EPS):
    x = x.astype(jnp.float32)
    y = y.astype(jnp.float32)
    xs_pos = jax.nn.sigmoid(x)
    xs_neg = jnp.minimum(1.0 - xs_pos + clip, 1.0)
    los = y * jnp.log(jnp.maximum(xs_pos, eps)) \
        + (1 - y) * jnp.log(jnp.maximum(xs_neg, eps))
    pt = xs_pos * y + xs_neg * (1 - y)
    g = gamma_pos * y + gamma_neg * (1 - y)
    los = los * jnp.power(1 - pt, g)
    return -jnp.mean(los)


if __name__ == "__main__":
    key = jax.random.PRNGKey(0)
    kx, ky = jax.random.split(key)
    N, C = 16, 128  # (batch, num_classes)
    x_f32 = jax.random.normal(kx, (N, C), dtype=jnp.float32) * 2.0
    y_bin = jax.random.uniform(ky, (N, C)) < 0.3

    # Recommended low-traffic path: int8 targets (exact for {0,1}).
    out = asymmetric_loss(x_f32, y_bin.astype(jnp.int8))
    out = jax.block_until_ready(out)
    ref = _reference(x_f32, y_bin.astype(jnp.float32))
    assert jnp.allclose(out, ref, rtol=1e-4, atol=1e-6), (out, ref)

    # bfloat16 logits path (cast to f32 in-kernel, f32 accumulation).
    x_bf16 = x_f32.astype(jnp.bfloat16)
    out_bf = asymmetric_loss(x_bf16, y_bin.astype(jnp.float32))
    out_bf = jax.block_until_ready(out_bf)
    ref_bf = _reference(x_bf16.astype(jnp.float32), y_bin.astype(jnp.float32))
    assert jnp.allclose(out_bf, ref_bf, rtol=1e-4, atol=1e-6), (out_bf, ref_bf)

    print("KERNEL_OK")
</pallas_src>

<mosaic_0001>
module attributes {stable_mosaic.version = 11 : i64} {
  func.func @_asl_kernel(%arg0: i32, %arg1: i32, %arg2: memref<32x128xf32, #tpu.memory_space<vmem>>, %arg3: memref<32x128xi8, #tpu.memory_space<vmem>>, %arg4: memref<1x8x128xf32, #tpu.memory_space<vmem>>) attributes {dimension_semantics = [#tpu.dimension_semantics<parallel>, #tpu.dimension_semantics<arbitrary>], iteration_bounds = array<i64: 1, 1>, scalar_prefetch = 0 : i64, scratch_operands = 0 : i64, tpu.core_type = #tpu.core_type<tc>, window_params = [{transform_indices = @transform_0, window_bounds = array<i64: 32, 128>}, {transform_indices = @transform_1, window_bounds = array<i64: 32, 128>}, {transform_indices = @transform_2, window_bounds = array<i64: 1, 8, 128>}]} {
    %c0 = arith.constant 0 : index
    %c0_0 = arith.constant 0 : index
    %0 = vector.load %arg2[%c0, %c0_0] : memref<32x128xf32, #tpu.memory_space<vmem>>, vector<32x128xf32>
    %c0_1 = arith.constant 0 : index
    %c0_2 = arith.constant 0 : index
    %1 = vector.load %arg3[%c0_1, %c0_2] : memref<32x128xi8, #tpu.memory_space<vmem>>, vector<32x128xi8>
    %c0_i8 = arith.constant 0 : i8
    %2 = vector.broadcast %c0_i8 : i8 to vector<32x128xi8>
    %3 = arith.cmpi ne, %1, %2 : vector<32x128xi8>
    %cst = arith.constant 5.000000e-01 : f32
    %4 = vector.broadcast %cst : f32 to vector<32x128xf32>
    %5 = arith.mulf %4, %0 : vector<32x128xf32>
    %6 = math.tanh %5 : vector<32x128xf32>
    %cst_3 = arith.constant 1.000000e+00 : f32
    %7 = vector.broadcast %cst_3 : f32 to vector<32x128xf32>
    %8 = arith.addf %6, %7 : vector<32x128xf32>
    %cst_4 = arith.constant 5.000000e-01 : f32
    %9 = vector.broadcast %cst_4 : f32 to vector<32x128xf32>
    %10 = arith.mulf %9, %8 : vector<32x128xf32>
    %cst_5 = arith.constant 1.000000e+00 : f32
    %11 = vector.broadcast %cst_5 : f32 to vector<32x128xf32>
    %12 = arith.subf %11, %10 : vector<32x128xf32>
    %cst_6 = arith.constant 5.000000e-02 : f32
    %13 = vector.broadcast %cst_6 : f32 to vector<32x128xf32>
    %14 = arith.addf %12, %13 : vector<32x128xf32>
    %cst_7 = arith.constant 1.000000e+00 : f32
    %15 = vector.broadcast %cst_7 : f32 to vector<32x128xf32>
    %16 = arith.minimumf %14, %15 : vector<32x128xf32>
    %17 = arith.select %3, %10, %16 : vector<32x128xi1>, vector<32x128xf32>
    %cst_8 = arith.constant 9.99999993E-9 : f32
    %18 = vector.broadcast %cst_8 : f32 to vector<32x128xf32>
    %19 = arith.maximumf %17, %18 : vector<32x128xf32>
    %20 = math.log %19 : vector<32x128xf32>
    %cst_9 = arith.constant 1.000000e+00 : f32
    %21 = vector.broadcast %cst_9 : f32 to vector<32x128xf32>
    %22 = arith.subf %21, %17 : vector<32x128xf32>
    %23 = arith.mulf %22, %22 : vector<32x128xf32>
    %24 = arith.mulf %23, %23 : vector<32x128xf32>
    %25 = arith.select %3, %22, %24 : vector<32x128xi1>, vector<32x128xf32>
    %26 = arith.mulf %20, %25 : vector<32x128xf32>
    %27 = tpu.iota {dimensions = array<i32: 0>} : vector<32x128xi32>
    %c32_i32 = arith.constant 32 : i32
    %28 = arith.muli %arg0, %c32_i32 : i32
    %29 = vector.broadcast %28 : i32 to vector<32x128xi32>
    %30 = arith.addi %27, %29 : vector<32x128xi32>
    %c16_i32 = arith.constant 16 : i32
    %31 = vector.broadcast %c16_i32 : i32 to vector<32x128xi32>
    %32 = arith.cmpi slt, %30, %31 : vector<32x128xi32>
    %cst_10 = arith.constant 0.000000e+00 : f32
    %33 = vector.broadcast %cst_10 : f32 to vector<32x128xf32>
    %34 = arith.select %32, %26, %33 : vector<32x128xi1>, vector<32x128xf32>
    %35 = vector.extract_strided_slice %34 {offsets = [0, 0], sizes = [8, 128], strides = [1, 1]} : vector<32x128xf32> to vector<8x128xf32>
    %36 = vector.extract_strided_slice %34 {offsets = [8, 0], sizes = [8, 128], strides = [1, 1]} : vector<32x128xf32> to vector<8x128xf32>
    %37 = arith.addf %35, %36 : vector<8x128xf32>
    %38 = vector.extract_strided_slice %34 {offsets = [16, 0], sizes = [8, 128], strides = [1, 1]} : vector<32x128xf32> to vector<8x128xf32>
    %39 = arith.addf %37, %38 : vector<8x128xf32>
    %40 = vector.extract_strided_slice %34 {offsets = [24, 0], sizes = [8, 128], strides = [1, 1]} : vector<32x128xf32> to vector<8x128xf32>
    %41 = arith.addf %39, %40 : vector<8x128xf32>
    %42 = vector.shape_cast %41 : vector<8x128xf32> to vector<1x8x128xf32>
    %c0_11 = arith.constant 0 : index
    %c0_12 = arith.constant 0 : index
    %c0_13 = arith.constant 0 : index
    %43 = vector.load %arg4[%c0_11, %c0_12, %c0_13] : memref<1x8x128xf32, #tpu.memory_space<vmem>>, vector<1x8x128xf32>
    tpu.vector_store %arg4[%c0_11, %c0_12, %c0_13], %42 {strides = array<i32>} : memref<1x8x128xf32, #tpu.memory_space<vmem>>, vector<1x8x128xf32>,
    return
  }
  func.func @transform_0(%arg0: i32, %arg1: i32) -> (i32, i32) {
    %c0_i32 = arith.constant 0 : i32
    return %arg0, %arg1 : i32, i32
  }
  func.func @transform_1(%arg0: i32, %arg1: i32) -> (i32, i32) {
    %c0_i32 = arith.constant 0 : i32
    return %arg0, %arg1 : i32, i32
  }
  func.func @transform_2(%arg0: i32, %arg1: i32) -> (i32, i32, i32) {
    %c0_i32 = arith.constant 0 : i32
    %c0_i32_0 = arith.constant 0 : i32
    %c0_i32_1 = arith.constant 0 : i32
    return %arg0, %c0_i32, %c0_i32_0 : i32, i32, i32
  }
}

</mosaic_0001>

<llo_original>
// kernel: tpu_custom_call.1
$region0: #{tpu_custom_call.1}
  #allocation0 [shape = 'u32[]', space=smem, size = 0x4, offset = 0x4, fixed_abs, tag = 'smem constant byte address 0x4 - core index']
  #allocation1 [shape = 'u32[144,128]{1,0:T(1,128)}', space=vmem, size = 0x12000, scoped, tag = 'internal scratch']
  %s0 = inlined_call_operand.hbm [shape: f32[32,128], index: 0, kind: input, shape index: {}]
  %s1 = inlined_call_operand.hbm [shape: s8[32,128], index: 1, kind: input, shape index: {}]
  %s2 = inlined_call_operand.hbm [shape: f32[1,8,128], index: 2, kind: output, shape index: {}]
  %s3 = sld [smem:[#allocation0]]
  $region26: #{tpu_custom_call.1} parent=0
    _
  %s5 = ssub.s32 1, %s3
  %s6 = scalar_select 0, %s5, %s3
  $region1: #{tpu_custom_call.1} parent=0
    #allocation2 [shape = 'u8[16384]{0}', space=vmem, size = 0x4000, scoped, tag = 'input window, operand 0, single buffered']
    #allocation3 [shape = 's32[1]{0}', space=sflag, size = 0x4, scoped, tag = 'scoped memory for tpu_custom_call.1']
    #allocation4 [shape = 's32[1]{0}', space=sflag, size = 0x4, scoped, tag = 'scoped memory for tpu_custom_call.1']
    #allocation5 [shape = 'u8[4096]{0}', space=vmem, size = 0x1000, scoped, tag = 'input window, operand 1, single buffered']
    #allocation6 [shape = 's32[1]{0}', space=sflag, size = 0x4, scoped, tag = 'scoped memory for tpu_custom_call.1']
    #allocation7 [shape = 'u8[4096]{0}', space=vmem, size = 0x1000, scoped, tag = 'output window, operand 0, single buffered']
    %7 = vsyncpa [#allocation3], 0
    %8 = vsyncpa [#allocation6], 0
    %9 = vsyncpa [#allocation4], 0
    // Predicated region
    $region2: #{tpu_custom_call.1} parent=1 // pred_check
      _
    $region3: #{tpu_custom_call.1} parent=1 // pred_check_branch
      %11 = sbr.rel (0) target = $region5
    $region4: #{tpu_custom_call.1} parent=1 // pred_region
      %s13 = ssub.s32 512, 512
      %14 = vsyncadd [#allocation3], %s13
      %s15 = sshll.u32 [#allocation2], 4
      %s16 = int_to_ptr.vmem [resolvable:$true] %s15
      %21 = dma.hbm_to_vmem [thread:$0]  %s0, 512, %s16, [#allocation3], 128, 128, 8
    $region5: #{tpu_custom_call.1} parent=1 // pred_fallthru
      _
    // Predicated region
    $region6: #{tpu_custom_call.1} parent=1 // pred_check
      _
    $region7: #{tpu_custom_call.1} parent=1 // pred_check_branch
      %23 = sbr.rel (0) target = $region9
    $region8: #{tpu_custom_call.1} parent=1 // pred_region
      %s25 = ssub.s32 128, 128
      %26 = vsyncadd [#allocation6], %s25
      %s28 = sshll.u32 [#allocation5], 4
      %s29 = int_to_ptr.vmem [resolvable:$true] %s28
      %31 = dma.hbm_to_vmem [thread:$0]  %s1, 128, %s29, [#allocation6]
    $region9: #{tpu_custom_call.1} parent=1 // pred_fallthru
      _
    // Predicated region
    $region10: #{tpu_custom_call.1} parent=1 // pred_check
      _
    $region11: #{tpu_custom_call.1} parent=1 // pred_check_branch
      %33 = sbr.rel (0) target = $region13
    $region12: #{tpu_custom_call.1} parent=1 // pred_region
      %34 = dma.done [#allocation3], 512
    $region13: #{tpu_custom_call.1} parent=1 // pred_fallthru
      _
    // Predicated region
    $region14: #{tpu_custom_call.1} parent=1 // pred_check
      _
    $region15: #{tpu_custom_call.1} parent=1 // pred_check_branch
      %36 = sbr.rel (0) target = $region17
    $region16: #{tpu_custom_call.1} parent=1 // pred_region
      %37 = dma.done [#allocation6], 128
    $region17: #{tpu_custom_call.1} parent=1 // pred_fallthru
      _
    %v40 = vld [vmem:[#allocation2] sm:$0xff]
    %v41 = vld [vmem:[#allocation2 + $0x8] sm:$0xff]
    %v42 = vld [vmem:[#allocation2 + $0x10] sm:$0xff]
    %v43 = vld [vmem:[#allocation2 + $0x18] sm:$0xff]
    %v44 = vld [vmem:[#allocation5] sm:$0xff]
    %vm45 = vnez %v44
    %v46 = vmul.f32 %v40, 0.5
    %v47 = vmul.f32 %v41, 0.5
    %v48 = vmul.f32 %v42, 0.5
    %v49 = vmul.f32 %v43, 0.5
    %v50 = vtanh.pop %v46
    %v51 = vtanh.pop %v47
    %v52 = vtanh.pop %v48
    %v53 = vtanh.pop %v49
    %v54 = vadd.f32 %v50, 1.0
    %v55 = vadd.f32 %v51, 1.0
    %v56 = vadd.f32 %v52, 1.0
    %v57 = vadd.f32 %v53, 1.0
    %v58 = vmul.f32 %v54, 0.5
    %v59 = vmul.f32 %v55, 0.5
    %v60 = vmul.f32 %v56, 0.5
    %v61 = vmul.f32 %v57, 0.5
    %v62 = vsub.f32 1.0, %v58
    %v63 = vsub.f32 1.0, %v59
    %v64 = vsub.f32 1.0, %v60
    %v65 = vsub.f32 1.0, %v61
    %v66 = vadd.f32 %v62, 0.05
    %v67 = vadd.f32 %v63, 0.05
    %v68 = vadd.f32 %v64, 0.05
    %v69 = vadd.f32 %v65, 0.05
    %v70 = vmin.f32 %v66, 1.0
    %v71 = vmin.f32 %v67, 1.0
    %v72 = vmin.f32 %v68, 1.0
    %v73 = vmin.f32 %v69, 1.0
    %v74 = vsel %vm45, 16843009, 0
    %v75 = vunpack.c.0.s8 %v74
    %v76 = vunpack.c.1.s8 %v74
    %v77 = vunpack.c.2.s8 %v74
    %v78 = vunpack.c.3.s8 %v74
    %v79 = vpack.c.b16 %v75, %v75
    %v80 = vpack.c.b8 %v79, %v79
    %v81 = vpack.c.b16 %v76, %v76
    %v82 = vpack.c.b8 %v81, %v81
    %v83 = vpack.c.b16 %v77, %v77
    %v84 = vpack.c.b8 %v83, %v83
    %v85 = vpack.c.b16 %v78, %v78
    %v86 = vpack.c.b8 %v85, %v85
    %vm87 = vnez %v80
    %vm88 = vnez %v82
    %vm89 = vnez %v84
    %vm90 = vnez %v86
    %v91 = vsel %vm87, 16843009, 0
    %v92 = vsel %vm88, 16843009, 0
    %v93 = vsel %vm89, 16843009, 0
    %v94 = vsel %vm90, 16843009, 0
    %v95 = vunpack.c.0.s8 %v91
    %v96 = vunpack.c.0.s8 %v92
    %v97 = vunpack.c.0.s8 %v93
    %v98 = vunpack.c.0.s8 %v94
    %vm99 = vcmp.ne.s32.totalorder %v95, 0
    %vm100 = vcmp.ne.s32.totalorder %v96, 0
    %vm101 = vcmp.ne.s32.totalorder %v97, 0
    %vm102 = vcmp.ne.s32.totalorder %v98, 0
    %v103 = vsel %vm99, %v58, %v70
    %v104 = vsel %vm100, %v59, %v71
    %v105 = vsel %vm101, %v60, %v72
    %v106 = vsel %vm102, %v61, %v73
    %v107 = vmax.f32 %v103, 1e-08
    %v108 = vmax.f32 %v104, 1e-08
    %v109 = vmax.f32 %v105, 1e-08
    %v110 = vmax.f32 %v106, 1e-08
    %v111 = vlog2.pop %v107
    %v112 = vmul.f32 %v111, 0.6931472
    %v113 = vlog2.pop %v108
    %v114 = vmul.f32 %v113, 0.6931472
    %v115 = vlog2.pop %v109
    %v116 = vmul.f32 %v115, 0.6931472
    %v117 = vlog2.pop %v110
    %v118 = vmul.f32 %v117, 0.6931472
    %v119 = vsub.f32 1.0, %v103
    %v120 = vsub.f32 1.0, %v104
    %v121 = vsub.f32 1.0, %v105
    %v122 = vsub.f32 1.0, %v106
    %v123 = vmul.f32 %v119, %v119
    %v124 = vmul.f32 %v120, %v120
    %v125 = vmul.f32 %v121, %v121
    %v126 = vmul.f32 %v122, %v122
    %v127 = vmul.f32 %v123, %v123
    %v128 = vmul.f32 %v124, %v124
    %v129 = vmul.f32 %v125, %v125
    %v130 = vmul.f32 %v126, %v126
    %v131 = vsel %vm99, %v119, %v127
    %v132 = vsel %vm100, %v120, %v128
    %v133 = vsel %vm101, %v121, %v129
    %v134 = vsel %vm102, %v122, %v130
    %v135 = vmul.f32 %v112, %v131
    %v136 = vmul.f32 %v114, %v132
    %v137 = vmul.f32 %v116, %v133
    %v138 = vmul.f32 %v118, %v134
    %v139 = vlaneseq
    %v140 = vshrl.u32 %v139, 7
    %v141 = vadd.s32 %v140, 8
    %v142 = vadd.s32 %v140, 16
    %v143 = vadd.s32 %v140, 24
    %s144 = smul.u32 0, 32
    %v145 = vstv %s144
    %v146 = vadd.s32 %v140, %v145
    %v147 = vadd.s32 %v141, %v145
    %v148 = vadd.s32 %v142, %v145
    %v149 = vadd.s32 %v143, %v145
    %vm150 = vcmp.lt.s32.totalorder %v146, 16
    %vm151 = vcmp.lt.s32.totalorder %v147, 16
    %vm152 = vcmp.lt.s32.totalorder %v148, 16
    %vm153 = vcmp.lt.s32.totalorder %v149, 16
    %v154 = vsel %vm150, %v135, 0.0
    %v155 = vsel %vm151, %v136, 0.0
    %v156 = vsel %vm152, %v137, 0.0
    %v157 = vsel %vm153, %v138, 0.0
    %v158 = vadd.f32 %v154, %v155
    %v159 = vadd.f32 %v158, %v156
    %v160 = vadd.f32 %v159, %v157
    %161 = vst [vmem:[#allocation7] sm:$0xff] %v160
    // Predicated region
    $region18: #{tpu_custom_call.1} parent=1 // pred_check
      _
    $region19: #{tpu_custom_call.1} parent=1 // pred_check_branch
      %163 = sbr.rel (0) target = $region21
    $region20: #{tpu_custom_call.1} parent=1 // pred_region
      %s165 = ssub.s32 128, 128
      %166 = vsyncadd [#allocation4], %s165
      %s168 = sshll.u32 [#allocation7], 4
      %s169 = int_to_ptr.vmem [resolvable:$true] %s168
      %171 = dma.vmem_to_hbm [thread:$0]  %s169, 128, %s2, [#allocation4]
    $region21: #{tpu_custom_call.1} parent=1 // pred_fallthru
      _
    // Predicated region
    $region22: #{tpu_custom_call.1} parent=1 // pred_check
      _
    $region23: #{tpu_custom_call.1} parent=1 // pred_check_branch
      %173 = sbr.rel (0) target = $region25
    $region24: #{tpu_custom_call.1} parent=1 // pred_region
      %174 = dma.done [#allocation4], 128
    $region25: #{tpu_custom_call.1} parent=1 // pred_fallthru
      _
    %175 = vsyncpa [#allocation3], 1
    %176 = vsyncpa [#allocation6], 1
    %177 = vsyncpa [#allocation4], 1

</llo_original>
